<compile_context>
chip_gen: v7x
topology: tpu7x:2x2x1
jax: 0.10.0
libtpu: 0.0.40
codegen_flags: <defaults>
</compile_context>

<pallas_src>
import functools

import jax
import jax.numpy as jnp
from jax.experimental import pallas as pl
from jax.experimental.pallas import tpu as pltpu


_LANES = 128
_SUBLANES = 8
_VMEM_BUDGET_BYTES = 20 * 1024 * 1024   # double-buffered x+out working set; v7x/v5e safe (< 32 MiB scoped)
_MIN_SPLIT_BYTES = 1 * 1024 * 1024      # only split tiles for megacore if each half still moves >= 1 MiB of x


def _round_up(v: int, m: int) -> int:
    return ((v + m - 1) // m) * m


def _pick_tile_rows(total_rows: int, x_row_bytes: int, out_row_bytes: int,
                    fixed_bytes: int = 0, max_rows=None) -> int:
    """Pick a row tile (multiple of 8 sublanes) from lane-padded VMEM byte counts.

    2 pipeline buffers each for the x tile and the output tile, plus `fixed_bytes` of resident
    operands (weight / structured-M, double-buffered), must fit _VMEM_BUDGET_BYTES.  The budget is
    sized for v7x's 64 MiB VMEM (32 MiB scoped default) and also holds on v5e because we raise
    vmem_limit_bytes to 32 MiB.  v6e (128 MiB) could take larger tiles but the measured HBM-roofline
    fraction plateaus well before this budget, so it is not special-cased.
    """
    per_row = 2 * (x_row_bytes + out_row_bytes)
    budget = max(_VMEM_BUDGET_BYTES - fixed_bytes, _SUBLANES * per_row)
    rows = max(_SUBLANES, budget // per_row)
    total8 = _round_up(total_rows, _SUBLANES)
    rows = min(rows, total8)
    # v7x has 2 TensorCores; dimension_semantics=("parallel",) only helps if the grid has >= 2
    # steps to shard.  Split when each half still moves a roofline-sized chunk of x.
    half = (total8 // 2) // _SUBLANES * _SUBLANES
    if half >= _SUBLANES and half * x_row_bytes >= _MIN_SPLIT_BYTES:
        rows = min(rows, half)
    if max_rows is not None:
        rows = min(rows, max(_SUBLANES, int(max_rows)))
    return max(_SUBLANES, (rows // _SUBLANES) * _SUBLANES)


# ----------------------------------------------------------------------------- kernels

def _linear_lane_packed_kernel(x_ref, m_ref, b_ref, o_ref, *, clamp: bool):
    # x_ref: (TR, 128*D) lane-dense tile of the flattened x view (each group of D lanes = one x row)
    # m_ref: (128*D, 128) structured weight matrix, resident in VMEM
    # b_ref: (1,)  bias scalar in SMEM
    # o_ref: (TR, 128) lane-dense output tile; o[r, k] = result for x row (tile_off + r)*128 + k
    h = jnp.dot(x_ref[...], m_ref[...], preferred_element_type=jnp.float32)
    h = h + b_ref[0]
    if clamp:
        h = jnp.clip(h, -10.0, 10.0)
    o_ref[...] = h.astype(o_ref.dtype)


def _linear_rowwise_kernel(x_ref, w_ref, b_ref, o_ref, *, clamp: bool):
    # x_ref: (TN, D) row tile, w_ref: (1, D) resident, b_ref: (1,) SMEM, o_ref: (TN, 1)
    x = x_ref[...]
    w = w_ref[...]
    if x.dtype != jnp.float32:          # module contract is f32; keep f32 accumulation regardless
        x = x.astype(jnp.float32)
        w = w.astype(jnp.float32)
    # VPU broadcast-multiply + lane reduce; out_features=1 would waste the MXU and the kernel is
    # HBM-bound, so this is fully hidden under the x DMA.
    h = jnp.sum(x * w, axis=-1, keepdims=True)          # (TN, 1) f32
    h = h + b_ref[0]
    if clamp:
        h = jnp.clip(h, -10.0, 10.0)
    o_ref[...] = h.astype(o_ref.dtype)


# ----------------------------------------------------------------------------- wrappers

def _linear_small_d(x, weight, bias, clamp, max_tile_rows):
    """Lane-packed path for D dividing 128 (D <= 16): lane-dense x view + lane-dense output."""
    N, D = x.shape
    xw = _LANES * D                                     # lanes per view row (multiple of 128)
    itemsize = x.dtype.itemsize

    r_needed = pl.cdiv(N, _LANES)                       # view rows needed (128 x-rows per view row)
    m_bytes = 2 * xw * _LANES * itemsize                # resident structured matrix, 2 pipeline buffers
    tr = _pick_tile_rows(r_needed, xw * itemsize, _LANES * itemsize,
                         fixed_bytes=m_bytes, max_rows=max_tile_rows)
    r_pad = _round_up(r_needed, tr)
    n_pad = r_pad * _LANES
    x_p = x if n_pad == N else jnp.pad(x, ((0, n_pad - N), (0, 0)))
    xv = x_p.reshape(r_pad, xw)                         # pure contiguous reshape: no data movement

    # Structured weight matrix: M[k*D + d, k] = w[d].  x_view @ M == per-row dot product, with the
    # 128 results of each view row landing on 128 dense lanes.
    w_col = weight.reshape(D, 1).astype(x.dtype)
    m = jnp.kron(jnp.eye(_LANES, dtype=x.dtype), w_col)  # (128*D, 128)

    kernel = functools.partial(_linear_lane_packed_kernel, clamp=clamp)
    out = pl.pallas_call(
        kernel,
        out_shape=jax.ShapeDtypeStruct((r_pad, _LANES), x.dtype),
        grid=(r_pad // tr,),
        in_specs=[
            # x view: row tiles, pipelined (double-buffered) across the grid.
            pl.BlockSpec((tr, xw), lambda i: (i, 0)),
            # structured weight matrix: same block every step -> resident in VMEM.
            pl.BlockSpec((xw, _LANES), lambda i: (0, 0)),
            # bias: scalar in SMEM.
            pl.BlockSpec(memory_space=pltpu.MemorySpace.SMEM),
        ],
        out_specs=pl.BlockSpec((tr, _LANES), lambda i: (i, 0)),   # lane-dense output blocks
        compiler_params=pltpu.CompilerParams(
            dimension_semantics=("parallel",),
            vmem_limit_bytes=32 * 1024 * 1024,
        ),
    )(xv, m, bias)

    out = out.reshape(n_pad, 1)                         # free, contiguous, order-preserving
    return out[:N] if n_pad != N else out


def _linear_general(x, weight, bias, clamp, max_tile_rows):
    """General-D path: (TN, D) row tiles, VPU reduce, (TN, 1) output blocks."""
    N, D = x.shape
    itemsize = x.dtype.itemsize
    d_padded = _round_up(D, _LANES)                     # lane-padded VMEM row bytes (budget fix)
    w_bytes = 2 * _SUBLANES * d_padded * itemsize       # resident (1, D) weight, 2 buffers, padded
    tn = _pick_tile_rows(N, d_padded * itemsize, _LANES * itemsize,
                         fixed_bytes=w_bytes, max_rows=max_tile_rows)
    n_pad = _round_up(N, tn)
    x_p = x if n_pad == N else jnp.pad(x, ((0, n_pad - N), (0, 0)))

    kernel = functools.partial(_linear_rowwise_kernel, clamp=clamp)
    out = pl.pallas_call(
        kernel,
        out_shape=jax.ShapeDtypeStruct((n_pad, 1), x.dtype),
        grid=(n_pad // tn,),
        in_specs=[
            pl.BlockSpec((tn, D), lambda i: (i, 0)),            # pipelined x row tiles
            pl.BlockSpec((1, D), lambda i: (0, 0)),             # resident weight
            pl.BlockSpec(memory_space=pltpu.MemorySpace.SMEM),  # bias scalar
        ],
        out_specs=pl.BlockSpec((tn, 1), lambda i: (i, 0)),
        compiler_params=pltpu.CompilerParams(
            dimension_semantics=("parallel",),
            vmem_limit_bytes=32 * 1024 * 1024,
        ),
    )(x_p, weight, bias)

    return out[:N] if n_pad != N else out


def linear_model(x: jax.Array, weight: jax.Array, bias: jax.Array,
                 clamp: bool = False, *, max_tile_rows=None) -> jax.Array:
    """Pallas equivalent of LinearModel.forward.

    x:      (N, D) float32
    weight: (1, D) float32   (nn.Linear weight, out_features=1)
    bias:   (1,)   float32
    returns (N, 1) float32
    max_tile_rows: optional cap on the row tile (testing / tuning hook).
    """
    N, D = x.shape
    assert weight.shape == (1, D)
    bias = bias.reshape(1)

    if D <= 16 and _LANES % D == 0:
        return _linear_small_d(x, weight, bias, clamp, max_tile_rows)
    return _linear_general(x, weight, bias, clamp, max_tile_rows)


if __name__ == "__main__":
    key = jax.random.PRNGKey(0)
    k_x, k_w, k_b, k_x2, k_x3, k_w3, k_b3 = jax.random.split(key, 7)

    # Module default: D=2, out_features=1 — small shapes.
    N, D = 8, 2
    # Deterministic parameter init mirroring the PyTorch module:
    #   self.w.weight.data.uniform_(-0.0001, 0.0001); default bias init uniform(-1/sqrt(D), 1/sqrt(D)).
    weight = jax.random.uniform(k_w, (1, D), jnp.float32, minval=-1e-4, maxval=1e-4)
    bound = 1.0 / (D ** 0.5)
    bias = jax.random.uniform(k_b, (1,), jnp.float32, minval=-bound, maxval=bound)
    x = jax.random.normal(k_x, (N, D), jnp.float32)

    # clamp=False path (default LinearModel(clamp=False)), small-D lane-packed kernel.
    out = jax.block_until_ready(linear_model(x, weight, bias, clamp=False))
    ref = x @ weight.T + bias[None, :]
    assert out.shape == (N, 1)
    assert jnp.allclose(out, ref, atol=1e-5, rtol=1e-5)

    # clamp=True path (scale x so pre-clamp values exceed [-10, 10]).
    out_c = jax.block_until_ready(linear_model(x * 1e6, weight, bias, clamp=True))
    ref_c = jnp.clip((x * 1e6) @ weight.T + bias[None, :], -10.0, 10.0)
    assert jnp.all(out_c <= 10.0) and jnp.all(out_c >= -10.0)
    assert jnp.allclose(out_c, ref_c, atol=1e-4, rtol=1e-5)

    # Small-D path with row padding and a multi-step grid (tile cap keeps shapes small).
    N2 = 2500
    x2 = jax.random.normal(k_x2, (N2, D), jnp.float32)
    out2 = jax.block_until_ready(linear_model(x2, weight, bias, clamp=False, max_tile_rows=8))
    ref2 = x2 @ weight.T + bias[None, :]
    assert out2.shape == (N2, 1)
    assert jnp.allclose(out2, ref2, atol=1e-5, rtol=1e-5)

    # General path (D not dividing 128), padded rows + multi-step grid.
    N3, D3 = 300, 40
    weight3 = jax.random.uniform(k_w3, (1, D3), jnp.float32, minval=-1e-4, maxval=1e-4)
    bias3 = jax.random.uniform(k_b3, (1,), jnp.float32, minval=-0.1, maxval=0.1)
    x3 = jax.random.normal(k_x3, (N3, D3), jnp.float32)
    out3 = jax.block_until_ready(linear_model(x3, weight3, bias3, clamp=False, max_tile_rows=64))
    ref3 = x3 @ weight3.T + bias3[None, :]
    assert out3.shape == (N3, 1)
    assert jnp.allclose(out3, ref3, atol=1e-4, rtol=1e-4)

    print("KERNEL_OK")
</pallas_src>

<mosaic_0001>
module attributes {stable_mosaic.version = 11 : i64} {
  func.func @_linear_lane_packed_kernel(%arg0: i32, %arg1: memref<8x256xf32, #tpu.memory_space<vmem>>, %arg2: memref<256x128xf32, #tpu.memory_space<vmem>>, %arg3: memref<1xf32, #tpu.memory_space<smem>>, %arg4: memref<8x128xf32, #tpu.memory_space<vmem>>) attributes {dimension_semantics = [#tpu.dimension_semantics<parallel>], iteration_bounds = array<i64: 1>, scalar_prefetch = 0 : i64, scratch_operands = 0 : i64, tpu.core_type = #tpu.core_type<tc>, window_params = [{transform_indices = @transform_0, window_bounds = array<i64: 8, 256>}, {pipeline_mode = #tpu.pipeline_mode<synchronous>, transform_indices = @transform_1, window_bounds = array<i64: 256, 128>}, {transform_indices = @transform_2, window_bounds = array<i64: 1>}, {transform_indices = @transform_3, window_bounds = array<i64: 8, 128>}]} {
    %c0 = arith.constant 0 : index
    %c0_0 = arith.constant 0 : index
    %0 = vector.load %arg1[%c0, %c0_0] : memref<8x256xf32, #tpu.memory_space<vmem>>, vector<8x256xf32>
    %c0_1 = arith.constant 0 : index
    %c0_2 = arith.constant 0 : index
    %1 = vector.load %arg2[%c0_1, %c0_2] : memref<256x128xf32, #tpu.memory_space<vmem>>, vector<256x128xf32>
    %cst = arith.constant dense<0.000000e+00> : vector<8x128xf32>
    %2 = tpu.matmul %0, %1, %cst {dimension_numbers = #tpu.dot_dimension_numbers<[1], [0], [0], [1], [0, 0, 1, 1], [], []>} : vector<8x256xf32>, vector<256x128xf32>, vector<8x128xf32> -> vector<8x128xf32>
    %c0_3 = arith.constant 0 : index
    %3 = memref.load %arg3[%c0_3] : memref<1xf32, #tpu.memory_space<smem>>
    %4 = vector.broadcast %3 : f32 to vector<8x128xf32>
    %5 = arith.addf %2, %4 : vector<8x128xf32>
    %c0_4 = arith.constant 0 : index
    %c0_5 = arith.constant 0 : index
    %6 = vector.load %arg4[%c0_4, %c0_5] : memref<8x128xf32, #tpu.memory_space<vmem>>, vector<8x128xf32>
    tpu.vector_store %arg4[%c0_4, %c0_5], %5 {strides = array<i32>} : memref<8x128xf32, #tpu.memory_space<vmem>>, vector<8x128xf32>,
    return
  }
  func.func @transform_0(%arg0: i32) -> (i32, i32) {
    %c0_i32 = arith.constant 0 : i32
    %c0_i32_0 = arith.constant 0 : i32
    return %arg0, %c0_i32 : i32, i32
  }
  func.func @transform_1(%arg0: i32) -> (i32, i32) {
    %c0_i32 = arith.constant 0 : i32
    %c0_i32_0 = arith.constant 0 : i32
    %c0_i32_1 = arith.constant 0 : i32
    return %c0_i32, %c0_i32_0 : i32, i32
  }
  func.func @transform_2(%arg0: i32) -> i32 {
    %c0_i32 = arith.constant 0 : i32
    %c0_i32_0 = arith.constant 0 : i32
    return %c0_i32 : i32
  }
  func.func @transform_3(%arg0: i32) -> (i32, i32) {
    %c0_i32 = arith.constant 0 : i32
    %c0_i32_0 = arith.constant 0 : i32
    return %arg0, %c0_i32 : i32, i32
  }
}

</mosaic_0001>

<llo_original>
// kernel: tpu_custom_call.1
$region0: #{tpu_custom_call.1}
  #allocation0 [shape = 'u32[]', space=smem, size = 0x4, offset = 0x4, fixed_abs, tag = 'smem constant byte address 0x4 - core index']
  #allocation1 [shape = 'u32[144,128]{1,0:T(1,128)}', space=vmem, size = 0x12000, scoped, tag = 'internal scratch']
  #allocation2 [shape = 'f32[1]{0:T(128)S(6)}', space=smem, size = 0x200, scoped, tag = 'scoped memory for tpu_custom_call.1']
  %s0 = inlined_call_operand.hbm [shape: f32[8,256], index: 0, kind: input, shape index: {}]
  %s1 = inlined_call_operand.hbm [shape: f32[256,128], index: 1, kind: input, shape index: {}]
  %s2 = inlined_call_operand.<no memory space> [shape: f32[1], index: 2, kind: input, shape index: {}]
  %s3 = inlined_call_operand.hbm [shape: f32[8,128], index: 3, kind: output, shape index: {}]
  %s4 = sld [smem:[#allocation0]]
  $region30: #{tpu_custom_call.1} parent=0
    _
  %s6 = ssub.s32 1, %s4
  %s7 = scalar_select 0, %s6, %s4
  %8 = sst [smem:[#allocation2]] %s2
  $region1: #{tpu_custom_call.1} parent=0
    #allocation3 [shape = 'u8[8192]{0}', space=vmem, size = 0x2000, scoped, tag = 'input window, operand 0, single buffered']
    #allocation4 [shape = 's32[1]{0}', space=sflag, size = 0x4, scoped, tag = 'scoped memory for tpu_custom_call.1']
    #allocation5 [shape = 's32[1]{0}', space=sflag, size = 0x4, scoped, tag = 'scoped memory for tpu_custom_call.1']
    #allocation6 [shape = 'u8[131072]{0}', space=vmem, size = 0x20000, scoped, tag = 'input window, operand 1, single buffered']
    #allocation7 [shape = 's32[1]{0}', space=sflag, size = 0x4, scoped, tag = 'scoped memory for tpu_custom_call.1']
    #allocation8 [shape = 'u8[4096]{0}', space=vmem, size = 0x1000, scoped, tag = 'output window, operand 0, single buffered']
    %9 = vsyncpa [#allocation4], 0
    %10 = vsyncpa [#allocation7], 0
    %11 = vsyncpa [#allocation5], 0
    // Predicated region
    $region2: #{tpu_custom_call.1} parent=1 // pred_check
      _
    $region3: #{tpu_custom_call.1} parent=1 // pred_check_branch
      %13 = sbr.rel (0) target = $region5
    $region4: #{tpu_custom_call.1} parent=1 // pred_region
      %s15 = ssub.s32 256, 256
      %16 = vsyncadd [#allocation4], %s15
      %s18 = sshll.u32 [#allocation3], 4
      %s19 = int_to_ptr.vmem [resolvable:$true] %s18
      %21 = dma.hbm_to_vmem [thread:$0]  %s0, 256, %s19, [#allocation4]
    $region5: #{tpu_custom_call.1} parent=1 // pred_fallthru
      _
    // Predicated region
    $region6: #{tpu_custom_call.1} parent=1 // pred_check
      _
    $region7: #{tpu_custom_call.1} parent=1 // pred_check_branch
      %23 = sbr.rel (0) target = $region9
    $region8: #{tpu_custom_call.1} parent=1 // pred_region
      %s25 = ssub.s32 4096, 4096
      %26 = vsyncadd [#allocation7], %s25
      %s27 = sshll.u32 [#allocation6], 4
      %s28 = int_to_ptr.vmem [resolvable:$true] %s27
      %33 = dma.hbm_to_vmem [thread:$0]  %s1, 4096, %s28, [#allocation7], 128, 128, 8
    $region9: #{tpu_custom_call.1} parent=1 // pred_fallthru
      _
    // Predicated region
    $region10: #{tpu_custom_call.1} parent=1 // pred_check
      _
    $region11: #{tpu_custom_call.1} parent=1 // pred_check_branch
      %35 = sbr.rel (0) target = $region13
    $region12: #{tpu_custom_call.1} parent=1 // pred_region
      _
    $region13: #{tpu_custom_call.1} parent=1 // pred_fallthru
      _
    // Predicated region
    $region14: #{tpu_custom_call.1} parent=1 // pred_check
      _
    $region15: #{tpu_custom_call.1} parent=1 // pred_check_branch
      %37 = sbr.rel (0) target = $region17
    $region16: #{tpu_custom_call.1} parent=1 // pred_region
      %38 = dma.done [#allocation4], 256
    $region17: #{tpu_custom_call.1} parent=1 // pred_fallthru
      _
    // Predicated region
    $region18: #{tpu_custom_call.1} parent=1 // pred_check
      _
    $region19: #{tpu_custom_call.1} parent=1 // pred_check_branch
      %40 = sbr.rel (0) target = $region21
    $region20: #{tpu_custom_call.1} parent=1 // pred_region
      %41 = dma.done [#allocation7], 4096
    $region21: #{tpu_custom_call.1} parent=1 // pred_fallthru
      _
    %v42 = vld [vmem:[#allocation3] sm:$0xff]
    %v43 = vld [vmem:[#allocation3 + $0x8] sm:$0xff]
    %v44 = vld [vmem:[#allocation6] sm:$0xff]
    %v45 = vld [vmem:[#allocation6 + $0x8] sm:$0xff]
    %v46 = vld [vmem:[#allocation6 + $0x10] sm:$0xff]
    %v47 = vld [vmem:[#allocation6 + $0x18] sm:$0xff]
    %v48 = vld [vmem:[#allocation6 + $0x20] sm:$0xff]
    %v49 = vld [vmem:[#allocation6 + $0x28] sm:$0xff]
    %v50 = vld [vmem:[#allocation6 + $0x30] sm:$0xff]
    %v51 = vld [vmem:[#allocation6 + $0x38] sm:$0xff]
    %v52 = vld [vmem:[#allocation6 + $0x40] sm:$0xff]
    %v53 = vld [vmem:[#allocation6 + $0x48] sm:$0xff]
    %v54 = vld [vmem:[#allocation6 + $0x50] sm:$0xff]
    %v55 = vld [vmem:[#allocation6 + $0x58] sm:$0xff]
    %v56 = vld [vmem:[#allocation6 + $0x60] sm:$0xff]
    %v57 = vld [vmem:[#allocation6 + $0x68] sm:$0xff]
    %v58 = vld [vmem:[#allocation6 + $0x70] sm:$0xff]
    %v59 = vld [vmem:[#allocation6 + $0x78] sm:$0xff]
    %v60 = vld [vmem:[#allocation6 + $0x80] sm:$0xff]
    %v61 = vld [vmem:[#allocation6 + $0x88] sm:$0xff]
    %v62 = vld [vmem:[#allocation6 + $0x90] sm:$0xff]
    %v63 = vld [vmem:[#allocation6 + $0x98] sm:$0xff]
    %v64 = vld [vmem:[#allocation6 + $0xa0] sm:$0xff]
    %v65 = vld [vmem:[#allocation6 + $0xa8] sm:$0xff]
    %v66 = vld [vmem:[#allocation6 + $0xb0] sm:$0xff]
    %v67 = vld [vmem:[#allocation6 + $0xb8] sm:$0xff]
    %v68 = vld [vmem:[#allocation6 + $0xc0] sm:$0xff]
    %v69 = vld [vmem:[#allocation6 + $0xc8] sm:$0xff]
    %v70 = vld [vmem:[#allocation6 + $0xd0] sm:$0xff]
    %v71 = vld [vmem:[#allocation6 + $0xd8] sm:$0xff]
    %v72 = vld [vmem:[#allocation6 + $0xe0] sm:$0xff]
    %v73 = vld [vmem:[#allocation6 + $0xe8] sm:$0xff]
    %v74 = vld [vmem:[#allocation6 + $0xf0] sm:$0xff]
    %v75 = vld [vmem:[#allocation6 + $0xf8] sm:$0xff]
    %s76 = sld [smem:[#allocation2]]
    %v77 = vstv %s76
    %78 = vmatprep.subr.mxu0 0.0
    %79 = vmatpush1.msra.mxu0 %v44
    %80 = vmatprep.subr.mxu0 0.0
    %81 = vmatpush1.msra.mxu0 %v45
    %82 = vmatprep.subr.mxu0 0.0
    %83 = vmatpush1.msra.mxu0 %v46
    %84 = vmatprep.subr.mxu0 0.0
    %85 = vmatpush1.msra.mxu0 %v47
    %86 = vmatprep.subr.mxu0 0.0
    %87 = vmatpush1.msra.mxu0 %v48
    %88 = vmatprep.subr.mxu0 0.0
    %89 = vmatpush1.msra.mxu0 %v49
    %90 = vmatprep.subr.mxu0 0.0
    %91 = vmatpush1.msra.mxu0 %v50
    %92 = vmatprep.subr.mxu0 0.0
    %93 = vmatpush1.msra.mxu0 %v51
    %94 = vmatprep.subr.mxu0 0.0
    %95 = vmatpush1.msra.mxu0 %v52
    %96 = vmatprep.subr.mxu0 0.0
    %97 = vmatpush1.msra.mxu0 %v53
    %98 = vmatprep.subr.mxu0 0.0
    %99 = vmatpush1.msra.mxu0 %v54
    %100 = vmatprep.subr.mxu0 0.0
    %101 = vmatpush1.msra.mxu0 %v55
    %102 = vmatprep.subr.mxu0 0.0
    %103 = vmatpush1.msra.mxu0 %v56
    %104 = vmatprep.subr.mxu0 0.0
    %105 = vmatpush1.msra.mxu0 %v57
    %106 = vmatprep.subr.mxu0 0.0
    %107 = vmatpush1.msra.mxu0 %v58
    %108 = vmatprep.subr.mxu0 0.0
    %109 = vmatpush1.msra.mxu0 %v59
    %110 = vmatprep.subr.mxu0 0.0
    %111 = vmatpush1.msra.mxu0 %v60
    %112 = vmatprep.subr.mxu0 0.0
    %113 = vmatpush1.msra.mxu0 %v61
    %114 = vmatprep.subr.mxu0 0.0
    %115 = vmatpush1.msra.mxu0 %v62
    %116 = vmatprep.subr.mxu0 0.0
    %117 = vmatpush1.msra.mxu0 %v63
    %118 = vmatprep.subr.mxu0 0.0
    %119 = vmatpush1.msra.mxu0 %v64
    %120 = vmatprep.subr.mxu0 0.0
    %121 = vmatpush1.msra.mxu0 %v65
    %122 = vmatprep.subr.mxu0 0.0
    %123 = vmatpush1.msra.mxu0 %v66
    %124 = vmatprep.subr.mxu0 0.0
    %125 = vmatpush1.msra.mxu0 %v67
    %126 = vmatprep.subr.mxu0 0.0
    %127 = vmatpush1.msra.mxu0 %v68
    %128 = vmatprep.subr.mxu0 0.0
    %129 = vmatpush1.msra.mxu0 %v69
    %130 = vmatprep.subr.mxu0 0.0
    %131 = vmatpush1.msra.mxu0 %v70
    %132 = vmatprep.subr.mxu0 0.0
    %133 = vmatpush1.msra.mxu0 %v71
    %134 = vmatprep.subr.mxu0 0.0
    %135 = vmatpush1.msra.mxu0 %v72
    %136 = vmatprep.subr.mxu0 0.0
    %137 = vmatpush1.msra.mxu0 %v73
    %138 = vmatprep.subr.mxu0 0.0
    %139 = vmatpush1.msra.mxu0 %v74
    %140 = vmatprep.subr.mxu0 0.0
    %141 = vmatpush1.msra.mxu0 %v75
    %142 = vmatprep.mubr.f32.mxu0 %v43
    %143 = vmatmul.mubr.f32.gmra.mrb[0].mxu0 %v42
    %v144 = vpop.f32.mrb[0].mxu0
    %v145 = vadd.f32 %v77, %v144
    %v146 = vpop.f32.mrb[0].mxu0
    %147 = vdwg.mxu0
    %148 = vst [vmem:[#allocation8] sm:$0xff] %v145
    // Predicated region
    $region22: #{tpu_custom_call.1} parent=1 // pred_check
      _
    $region23: #{tpu_custom_call.1} parent=1 // pred_check_branch
      %150 = sbr.rel (0) target = $region25
    $region24: #{tpu_custom_call.1} parent=1 // pred_region
      %s152 = ssub.s32 128, 128
      %153 = vsyncadd [#allocation5], %s152
      %s155 = sshll.u32 [#allocation8], 4
      %s156 = int_to_ptr.vmem [resolvable:$true] %s155
      %158 = dma.vmem_to_hbm [thread:$0]  %s156, 128, %s3, [#allocation5]
    $region25: #{tpu_custom_call.1} parent=1 // pred_fallthru
      _
    // Predicated region
    $region26: #{tpu_custom_call.1} parent=1 // pred_check
      _
    $region27: #{tpu_custom_call.1} parent=1 // pred_check_branch
      %160 = sbr.rel (0) target = $region29
    $region28: #{tpu_custom_call.1} parent=1 // pred_region
      %161 = dma.done [#allocation5], 128
    $region29: #{tpu_custom_call.1} parent=1 // pred_fallthru
      _
    %162 = vsyncpa [#allocation4], 1
    %163 = vsyncpa [#allocation7], 1
    %164 = vsyncpa [#allocation5], 1

</llo_original>
